<compile_context>
chip_gen: v6e
topology: v6e:2x2x1
jax: 0.10.0
libtpu: 0.0.40
codegen_flags: <defaults>
</compile_context>

<pallas_src>
import functools

import jax
import jax.numpy as jnp
from jax.experimental import pallas as pl
from jax.experimental.pallas import tpu as pltpu


# ---------------------------------------------------------------------------
# Kernels
# ---------------------------------------------------------------------------

def _se_fused_kernel(x_ref, w1_ref, b1_ref, w2_ref, b2_ref, o_ref, *, inv_hw):
    """Single-pass SE: pool -> fc1/relu -> fc2/sigmoid -> scale.

    x_ref block: (TB, C, HW), native NCHW-flat layout (HW on lanes).
    """
    x = x_ref[...]                                                 # (TB, C, HW)
    # Squeeze: f32-accumulated sum over the spatial (lane) axis.
    y = jnp.sum(x, axis=-1, dtype=jnp.float32) * inv_hw            # (TB, C)
    # Excitation: the two 1x1 convs are tiny row-major matmuls.
    h = jnp.dot(y, w1_ref[...], preferred_element_type=jnp.float32) + b1_ref[...]
    h = jnp.maximum(h, 0.0)                                        # (TB, C_r)
    s = jnp.dot(h, w2_ref[...], preferred_element_type=jnp.float32) + b2_ref[...]
    s = jax.nn.sigmoid(s)                                          # (TB, C)
    # Scale: per-(batch, channel) gate broadcast over the spatial lane axis.
    o_ref[...] = (x * s[:, :, None].astype(x.dtype)).astype(o_ref.dtype)


def _se_gate_kernel(x_ref, w1_ref, b1_ref, w2_ref, b2_ref, gate_ref, acc_ref,
                    *, inv_hw):
    """Two-pass path, pass 1: accumulate the pooled sum over HW tiles
    ("arbitrary" axis) and finalize the excitation at the last HW step."""
    hstep = pl.program_id(1)

    @pl.when(hstep == 0)
    def _():
        acc_ref[...] = jnp.zeros_like(acc_ref)

    acc_ref[...] += jnp.sum(x_ref[...], axis=-1, dtype=jnp.float32)

    @pl.when(hstep == pl.num_programs(1) - 1)
    def _():
        y = acc_ref[...] * inv_hw                                  # (TB, C)
        h = jnp.dot(y, w1_ref[...], preferred_element_type=jnp.float32) + b1_ref[...]
        h = jnp.maximum(h, 0.0)
        s = jnp.dot(h, w2_ref[...], preferred_element_type=jnp.float32) + b2_ref[...]
        gate_ref[...] = jax.nn.sigmoid(s)


def _se_scale_kernel(x_ref, gate_ref, o_ref):
    """Two-pass path, pass 2: o = x * gate, streamed over HW tiles."""
    x = x_ref[...]                                                 # (TB, C, THW)
    o_ref[...] = (x * gate_ref[...][:, :, None].astype(x.dtype)).astype(o_ref.dtype)


# ---------------------------------------------------------------------------
# Wrapper / tiling logic
# ---------------------------------------------------------------------------

def _tpu_config():
    """Generation-aware block-size / VMEM budget."""
    kind = ""
    try:
        kind = jax.devices()[0].device_kind.lower()
    except Exception:
        pass
    if "v7" in kind:
        # 64 MiB VMEM per TC, 2 TCs: smaller blocks, keep >= 2 grid steps.
        return {"block_bytes": 4 << 20, "vmem_limit": 48 << 20, "min_steps": 2}
    if "v5" in kind or "v6" in kind:
        # 128 MiB VMEM, single TC: bigger streaming blocks, no step minimum.
        return {"block_bytes": 8 << 20, "vmem_limit": 64 << 20, "min_steps": 1}
    # Unknown generation: conservative settings, safe everywhere.
    return {"block_bytes": 4 << 20, "vmem_limit": 32 << 20, "min_steps": 2}


def _pick_batch_tile(B, bytes_per_batch, block_bytes, min_steps):
    """Largest batch tile within the byte budget; prefer a divisor of B (no
    pad / no extra slice copy) when a big-enough one exists, and leave at
    least `min_steps` grid steps (v7x megacore)."""
    tb_max = max(1, block_bytes // bytes_per_batch)
    tb_max = min(tb_max, B)
    if min_steps > 1 and B >= min_steps:
        tb_max = min(tb_max, max(1, -(-B // min_steps)))
    best_div = 1
    for d in range(1, tb_max + 1):
        if B % d == 0:
            best_div = d
    if best_div * 2 >= tb_max:     # close enough: avoid pad + slice copies
        return best_div
    return tb_max                  # awkward B: pad instead of tiny tiles


def _se_fused(x_flat, w1_t, b1_row, w2_t, b2_row, inv_hw,
              block_bytes, vmem_limit, min_steps):
    B, C, HW = x_flat.shape
    C_r = w1_t.shape[1]
    itemsize = jnp.dtype(x_flat.dtype).itemsize
    bytes_per_batch = C * HW * itemsize

    tb = _pick_batch_tile(B, bytes_per_batch, block_bytes, min_steps)
    b_pad = pl.cdiv(B, tb) * tb
    if b_pad != B:
        x_flat = jnp.pad(x_flat, ((0, b_pad - B), (0, 0), (0, 0)))
    grid = (b_pad // tb,)

    weight_bytes = (w1_t.size + w2_t.size + b1_row.size + b2_row.size) * itemsize
    cost = pl.CostEstimate(
        flops=int(4 * B * C * C_r + 2 * B * HW * C),
        transcendentals=int(B * C),
        bytes_accessed=int(2 * B * HW * C * itemsize + weight_bytes),
    )

    out = pl.pallas_call(
        functools.partial(_se_fused_kernel, inv_hw=inv_hw),
        out_shape=jax.ShapeDtypeStruct((b_pad, C, HW), x_flat.dtype),
        grid_spec=pltpu.PrefetchScalarGridSpec(
            num_scalar_prefetch=0,
            grid=grid,
            in_specs=[
                pl.BlockSpec((tb, C, HW), lambda b: (b, 0, 0)),
                pl.BlockSpec((C, C_r), lambda b: (0, 0)),
                pl.BlockSpec((1, C_r), lambda b: (0, 0)),
                pl.BlockSpec((C_r, C), lambda b: (0, 0)),
                pl.BlockSpec((1, C), lambda b: (0, 0)),
            ],
            out_specs=pl.BlockSpec((tb, C, HW), lambda b: (b, 0, 0)),
        ),
        compiler_params=pltpu.CompilerParams(
            dimension_semantics=("parallel",),
            vmem_limit_bytes=vmem_limit,
        ),
        cost_estimate=cost,
    )(x_flat, w1_t, b1_row, w2_t, b2_row)

    return out[:B] if b_pad != B else out


def _se_two_pass(x_flat, w1_t, b1_row, w2_t, b2_row, inv_hw,
                 block_bytes, vmem_limit):
    """For shapes where one batch's (C, HW) slab exceeds the block budget."""
    B, C, HW = x_flat.shape
    C_r = w1_t.shape[1]
    itemsize = jnp.dtype(x_flat.dtype).itemsize

    # Batch tile: full B if small, else 8 (so (TB, C) gate blocks satisfy the
    # sublane-multiple-of-8 layout rule).
    tb = B if B <= 8 else 8
    b_pad = pl.cdiv(B, tb) * tb

    # Spatial tile: multiple of 128 lanes, sized so a (TB, C, THW) block fits.
    thw = (block_bytes // (tb * C * itemsize)) // 128 * 128
    thw = max(128, thw)
    thw = min(thw, pl.cdiv(HW, 128) * 128)
    hw_pad = pl.cdiv(HW, thw) * thw

    if (b_pad, hw_pad) != (B, HW):
        x_flat = jnp.pad(x_flat, ((0, b_pad - B), (0, 0), (0, hw_pad - HW)))
    n_b = b_pad // tb
    n_hw = hw_pad // thw

    # Pass 1: pooled gate (f32); HW is an "arbitrary" reduction axis with a
    # VMEM accumulator, excitation finalized on the last HW step.
    gate = pl.pallas_call(
        functools.partial(_se_gate_kernel, inv_hw=inv_hw),
        out_shape=jax.ShapeDtypeStruct((b_pad, C), jnp.float32),
        grid_spec=pltpu.PrefetchScalarGridSpec(
            num_scalar_prefetch=0,
            grid=(n_b, n_hw),
            in_specs=[
                pl.BlockSpec((tb, C, thw), lambda b, h: (b, 0, h)),
                pl.BlockSpec((C, C_r), lambda b, h: (0, 0)),
                pl.BlockSpec((1, C_r), lambda b, h: (0, 0)),
                pl.BlockSpec((C_r, C), lambda b, h: (0, 0)),
                pl.BlockSpec((1, C), lambda b, h: (0, 0)),
            ],
            out_specs=pl.BlockSpec((tb, C), lambda b, h: (b, 0)),
            scratch_shapes=[pltpu.VMEM((tb, C), jnp.float32)],
        ),
        compiler_params=pltpu.CompilerParams(
            dimension_semantics=("parallel", "arbitrary"),
            vmem_limit_bytes=vmem_limit,
        ),
    )(x_flat, w1_t, b1_row, w2_t, b2_row)

    # Pass 2: stream x again and apply the gate.
    out = pl.pallas_call(
        _se_scale_kernel,
        out_shape=jax.ShapeDtypeStruct((b_pad, C, hw_pad), x_flat.dtype),
        grid_spec=pltpu.PrefetchScalarGridSpec(
            num_scalar_prefetch=0,
            grid=(n_b, n_hw),
            in_specs=[
                pl.BlockSpec((tb, C, thw), lambda b, h: (b, 0, h)),
                pl.BlockSpec((tb, C), lambda b, h: (b, 0)),
            ],
            out_specs=pl.BlockSpec((tb, C, thw), lambda b, h: (b, 0, h)),
        ),
        compiler_params=pltpu.CompilerParams(
            dimension_semantics=("parallel", "parallel"),
            vmem_limit_bytes=vmem_limit,
        ),
    )(x_flat, gate)

    if (b_pad, hw_pad) != (B, HW):
        out = out[:B, :, :HW]
    return out


def se_block(x, w1, b1, w2, b2, *, max_block_bytes=None):
    """SEBlock forward. x: (B, C, H, W) NCHW like PyTorch; same shape out.

    w1: (C_r, C) = fc1 1x1-conv weight squeezed, b1: (C_r,)
    w2: (C, C_r) = fc2 1x1-conv weight squeezed, b2: (C,)
    """
    B, C, H, W = x.shape
    HW = H * W
    C_r = w1.shape[0]
    itemsize = jnp.dtype(x.dtype).itemsize

    cfg = _tpu_config()
    block_bytes = int(max_block_bytes) if max_block_bytes else cfg["block_bytes"]
    vmem_limit = cfg["vmem_limit"]
    min_steps = cfg["min_steps"]

    # Native NCHW-flat layout — no HBM transposes in the wrapper.
    x_flat = x.reshape(B, C, HW)

    # 1x1-conv weights transposed so squeeze/excite are row-major matmuls;
    # biases as row vectors against the lane-dense activations.
    w1_t = jnp.transpose(w1)           # (C, C_r)
    w2_t = jnp.transpose(w2)           # (C_r, C)
    b1_row = b1.reshape(1, C_r)
    b2_row = b2.reshape(1, C)

    inv_hw = 1.0 / float(HW)
    bytes_per_batch = C * HW * itemsize

    if bytes_per_batch <= block_bytes:
        out_flat = _se_fused(x_flat, w1_t, b1_row, w2_t, b2_row, inv_hw,
                             block_bytes, vmem_limit, min_steps)
    else:
        out_flat = _se_two_pass(x_flat, w1_t, b1_row, w2_t, b2_row, inv_hw,
                                block_bytes, vmem_limit)
    return out_flat.reshape(B, C, H, W)


# ---------------------------------------------------------------------------
# Pure-JAX reference mirroring the PyTorch forward
# ---------------------------------------------------------------------------

def se_block_reference(x, w1, b1, w2, b2):
    y = jnp.mean(x, axis=(2, 3), keepdims=True)                         # (B,C,1,1)
    h = jnp.maximum(jnp.einsum('rc,bcij->brij', w1, y)
                    + b1[None, :, None, None], 0.0)                     # (B,C_r,1,1)
    s = jax.nn.sigmoid(jnp.einsum('cr,brij->bcij', w2, h)
                       + b2[None, :, None, None])                       # (B,C,1,1)
    return x * s


if __name__ == "__main__":
    root = jax.random.PRNGKey(0)
    k_test1, k_test2 = jax.random.split(root, 2)

    def make_inputs(key, B, C, H, W, C_r):
        kx, kw1, kb1, kw2, kb2 = jax.random.split(key, 5)
        x = jax.random.normal(kx, (B, C, H, W), dtype=jnp.float32)
        w1 = 0.1 * jax.random.normal(kw1, (C_r, C), dtype=jnp.float32)
        b1 = 0.1 * jax.random.normal(kb1, (C_r,), dtype=jnp.float32)
        w2 = 0.1 * jax.random.normal(kw2, (C, C_r), dtype=jnp.float32)
        b2 = 0.1 * jax.random.normal(kb2, (C,), dtype=jnp.float32)
        return x, w1, b1, w2, b2

    reduction = 16

    # Test 1: fused single-pass path (SEBlock(in_channels=32, reduction=16)).
    B, C, H, W = 4, 32, 8, 8
    x, w1, b1, w2, b2 = make_inputs(k_test1, B, C, H, W, C // reduction)
    out = jax.block_until_ready(se_block(x, w1, b1, w2, b2))
    ref = se_block_reference(x, w1, b1, w2, b2)
    assert out.shape == x.shape and out.dtype == x.dtype
    assert jnp.allclose(out, ref, atol=1e-5, rtol=1e-5), "fused path mismatch"

    # Test 2: two-pass (HW-tiled "arbitrary" reduction) path, forced by a tiny
    # per-block byte budget so the large-shape fallback is exercised too.
    B2, C2, H2, W2 = 2, 32, 16, 16
    x2, w1b, b1b, w2b, b2b = make_inputs(k_test2, B2, C2, H2, W2, C2 // reduction)
    out2 = jax.block_until_ready(
        se_block(x2, w1b, b1b, w2b, b2b, max_block_bytes=4096))
    ref2 = se_block_reference(x2, w1b, b1b, w2b, b2b)
    assert jnp.allclose(out2, ref2, atol=1e-5, rtol=1e-5), "two-pass path mismatch"

    print("KERNEL_OK")
</pallas_src>

<mosaic_0001>
module attributes {stable_mosaic.version = 11 : i64} {
  func.func @_se_fused_kernel(%arg0: i32, %arg1: memref<2x32x64xf32, #tpu.memory_space<vmem>>, %arg2: memref<32x2xf32, #tpu.memory_space<vmem>>, %arg3: memref<1x2xf32, #tpu.memory_space<vmem>>, %arg4: memref<2x32xf32, #tpu.memory_space<vmem>>, %arg5: memref<1x32xf32, #tpu.memory_space<vmem>>, %arg6: memref<2x32x64xf32, #tpu.memory_space<vmem>>) attributes {dimension_semantics = [#tpu.dimension_semantics<parallel>], iteration_bounds = array<i64: 2>, scalar_prefetch = 0 : i64, scratch_operands = 0 : i64, tpu.core_type = #tpu.core_type<tc>, window_params = [{transform_indices = @transform_0, window_bounds = array<i64: 2, 32, 64>}, {pipeline_mode = #tpu.pipeline_mode<synchronous>, transform_indices = @transform_1, window_bounds = array<i64: 32, 2>}, {pipeline_mode = #tpu.pipeline_mode<synchronous>, transform_indices = @transform_2, window_bounds = array<i64: 1, 2>}, {pipeline_mode = #tpu.pipeline_mode<synchronous>, transform_indices = @transform_3, window_bounds = array<i64: 2, 32>}, {pipeline_mode = #tpu.pipeline_mode<synchronous>, transform_indices = @transform_4, window_bounds = array<i64: 1, 32>}, {transform_indices = @transform_5, window_bounds = array<i64: 2, 32, 64>}]} {
    %c0 = arith.constant 0 : index
    %c0_0 = arith.constant 0 : index
    %c0_1 = arith.constant 0 : index
    %0 = vector.load %arg1[%c0, %c0_0, %c0_1] : memref<2x32x64xf32, #tpu.memory_space<vmem>>, vector<2x32x64xf32>
    %cst = arith.constant dense<0.000000e+00> : vector<2x32xf32>
    %1 = vector.multi_reduction <add>, %0, %cst [2] : vector<2x32x64xf32> to vector<2x32xf32>
    %cst_2 = arith.constant 1.562500e-02 : f32
    %2 = vector.broadcast %cst_2 : f32 to vector<2x32xf32>
    %3 = arith.mulf %1, %2 : vector<2x32xf32>
    %c0_3 = arith.constant 0 : index
    %c0_4 = arith.constant 0 : index
    %4 = vector.load %arg2[%c0_3, %c0_4] : memref<32x2xf32, #tpu.memory_space<vmem>>, vector<32x2xf32>
    %cst_5 = arith.constant dense<0.000000e+00> : vector<2x2xf32>
    %5 = tpu.matmul %3, %4, %cst_5 {dimension_numbers = #tpu.dot_dimension_numbers<[1], [0], [0], [1], [0, 0, 1, 1], [], []>} : vector<2x32xf32>, vector<32x2xf32>, vector<2x2xf32> -> vector<2x2xf32>
    %c0_6 = arith.constant 0 : index
    %c0_7 = arith.constant 0 : index
    %6 = vector.load %arg3[%c0_6, %c0_7] : memref<1x2xf32, #tpu.memory_space<vmem>>, vector<1x2xf32>
    %7 = vector.broadcast %6 : vector<1x2xf32> to vector<2x2xf32>
    %8 = arith.addf %5, %7 : vector<2x2xf32>
    %cst_8 = arith.constant 0.000000e+00 : f32
    %9 = vector.broadcast %cst_8 : f32 to vector<2x2xf32>
    %10 = arith.maximumf %8, %9 : vector<2x2xf32>
    %c0_9 = arith.constant 0 : index
    %c0_10 = arith.constant 0 : index
    %11 = vector.load %arg4[%c0_9, %c0_10] : memref<2x32xf32, #tpu.memory_space<vmem>>, vector<2x32xf32>
    %cst_11 = arith.constant dense<0.000000e+00> : vector<2x32xf32>
    %12 = tpu.matmul %10, %11, %cst_11 {dimension_numbers = #tpu.dot_dimension_numbers<[1], [0], [0], [1], [0, 0, 1, 1], [], []>} : vector<2x2xf32>, vector<2x32xf32>, vector<2x32xf32> -> vector<2x32xf32>
    %c0_12 = arith.constant 0 : index
    %c0_13 = arith.constant 0 : index
    %13 = vector.load %arg5[%c0_12, %c0_13] : memref<1x32xf32, #tpu.memory_space<vmem>>, vector<1x32xf32>
    %14 = vector.broadcast %13 : vector<1x32xf32> to vector<2x32xf32>
    %15 = arith.addf %12, %14 : vector<2x32xf32>
    %16 = arith.negf %15 : vector<2x32xf32>
    %17 = math.exp %16 : vector<2x32xf32>
    %cst_14 = arith.constant 1.000000e+00 : f32
    %18 = vector.broadcast %cst_14 : f32 to vector<2x32xf32>
    %19 = arith.addf %18, %17 : vector<2x32xf32>
    %20 = arith.divf %18, %19 : vector<2x32xf32>
    %21 = vector.shape_cast %20 : vector<2x32xf32> to vector<2x32x1xf32>
    %22 = vector.broadcast %21 : vector<2x32x1xf32> to vector<2x32x64xf32>
    %23 = arith.mulf %0, %22 : vector<2x32x64xf32>
    %c0_15 = arith.constant 0 : index
    %c0_16 = arith.constant 0 : index
    %c0_17 = arith.constant 0 : index
    %24 = vector.load %arg6[%c0_15, %c0_16, %c0_17] : memref<2x32x64xf32, #tpu.memory_space<vmem>>, vector<2x32x64xf32>
    tpu.vector_store %arg6[%c0_15, %c0_16, %c0_17], %23 {strides = array<i32>} : memref<2x32x64xf32, #tpu.memory_space<vmem>>, vector<2x32x64xf32>,
    return
  }
  func.func @transform_0(%arg0: i32) -> (i32, i32, i32) {
    %c0_i32 = arith.constant 0 : i32
    %c0_i32_0 = arith.constant 0 : i32
    %c0_i32_1 = arith.constant 0 : i32
    return %arg0, %c0_i32, %c0_i32_0 : i32, i32, i32
  }
  func.func @transform_1(%arg0: i32) -> (i32, i32) {
    %c0_i32 = arith.constant 0 : i32
    %c0_i32_0 = arith.constant 0 : i32
    %c0_i32_1 = arith.constant 0 : i32
    return %c0_i32, %c0_i32_0 : i32, i32
  }
  func.func @transform_2(%arg0: i32) -> (i32, i32) {
    %c0_i32 = arith.constant 0 : i32
    %c0_i32_0 = arith.constant 0 : i32
    %c0_i32_1 = arith.constant 0 : i32
    return %c0_i32, %c0_i32_0 : i32, i32
  }
  func.func @transform_3(%arg0: i32) -> (i32, i32) {
    %c0_i32 = arith.constant 0 : i32
    %c0_i32_0 = arith.constant 0 : i32
    %c0_i32_1 = arith.constant 0 : i32
    return %c0_i32, %c0_i32_0 : i32, i32
  }
  func.func @transform_4(%arg0: i32) -> (i32, i32) {
    %c0_i32 = arith.constant 0 : i32
    %c0_i32_0 = arith.constant 0 : i32
    %c0_i32_1 = arith.constant 0 : i32
    return %c0_i32, %c0_i32_0 : i32, i32
  }
  func.func @transform_5(%arg0: i32) -> (i32, i32, i32) {
    %c0_i32 = arith.constant 0 : i32
    %c0_i32_0 = arith.constant 0 : i32
    %c0_i32_1 = arith.constant 0 : i32
    return %arg0, %c0_i32, %c0_i32_0 : i32, i32, i32
  }
}

</mosaic_0001>

<llo_original>
// kernel: tpu_custom_call.1
$region0: #{tpu_custom_call.1}
  #allocation0 [shape = 'u32[]', space=smem, size = 0x4, offset = 0x4, fixed_abs, tag = 'smem constant byte address 0x4 - core index']
  #allocation1 [shape = 'u32[144,128]{1,0:T(1,128)}', space=vmem, size = 0x12000, scoped, tag = 'internal scratch']
  %s0 = inlined_call_operand.hbm [shape: f32[4,32,64], index: 0, kind: input, shape index: {}]
  %s1 = inlined_call_operand.vmem [shape: f32[32,2], index: 1, kind: input, shape index: {}]
  %s2 = inlined_call_operand.vmem [shape: f32[1,2], index: 2, kind: input, shape index: {}]
  %s3 = inlined_call_operand.vmem [shape: f32[2,32], index: 3, kind: input, shape index: {}]
  %s4 = inlined_call_operand.vmem [shape: f32[1,32], index: 4, kind: input, shape index: {}]
  %s5 = inlined_call_operand.hbm [shape: f32[4,32,64], index: 5, kind: output, shape index: {}]
  %s6 = sld [smem:[#allocation0]]
  $region57: #{tpu_custom_call.1} parent=0
    _
  %s8 = ssub.s32 1, %s6
  %s9 = scalar_select 0, %s8, %s6
  $region1: #{tpu_custom_call.1} parent=0
    #allocation2 [shape = 'u8[65536]{0}', space=vmem, size = 0x10000, scoped, tag = 'input window, operand 0']
    #allocation3 [shape = 's32[2]{0}', space=sflag, size = 0x8, scoped, tag = 'scoped memory for tpu_custom_call.1']
    #allocation4 [shape = 's32[2]{0}', space=sflag, size = 0x8, scoped, tag = 'scoped memory for tpu_custom_call.1']
    #allocation5 [shape = 'u8[65536]{0}', space=vmem, size = 0x10000, scoped, tag = 'output window, operand 0']
    %10 = vsyncpa [#allocation3], 0
    %s11 = scalar_lea.sflag [#allocation3], 1
    %12 = vsyncpa %s11, 0
    %13 = vsyncpa [#allocation4], 0
    %s14 = scalar_lea.sflag [#allocation4], 1
    %15 = vsyncpa %s14, 0
    loop: start=0, step=1, limit=4
    $region2: #{tpu_custom_call.1} parent=1 // loop_pre_header
      _
    $region3: #{tpu_custom_call.1} parent=1 // loop_header
      %s17 = sphi 0, %s21
      %p18 = scmp.ge.s32.totalorder %s17, 4
      %s27 = sphi 0, %s29
      %s30 = sphi 0, %s27
      %s31 = sphi 0, %s30
      %s47 = sphi 0, %s31
      %s51 = sphi 0, %s51
      %s53 = sphi 0, %s51
      %s54 = sphi 0, %s53
      %s68 = sphi 0, %s54
      %s72 = sphi 0, %s72
      %s74 = sphi 0, %s72
      %s75 = sphi 0, %s74
      %s89 = sphi 0, %s75
      %s93 = sphi 0, %s93
      %s95 = sphi 0, %s93
      %s96 = sphi 0, %s95
      %s110 = sphi 0, %s96
      %s114 = sphi 0, %s114
      %s116 = sphi 0, %s114
      %s117 = sphi 0, %s116
      %s131 = sphi 0, %s117
      %s137 = sphi 0, %s139
      %s140 = sphi 0, %s137
      %s141 = sphi 0, %s140
      %s157 = sphi 0, %s141
    $region4: #{tpu_custom_call.1} parent=1 // loop_header_branch
      %20 = sbr.rel (%p18) target = $region8
    $region5: #{tpu_custom_call.1} parent=1 // loop_body
      %s22 = ssub.s32 %s17, 1
      %s23 = ssub.s32 %s17, 2
      %s24 = sadd.s32 %s17, 1
      %s25 = ssub.s32 %s17, %s24
      %p26 = scmp.eq.s32.totalorder %s25, 0
      %s28 = sadd.s32 %s27, 1
      %s29 = scalar_select %p26, %s27, %s28
      %p32 = pneg %p26
      %p33 = scmp.eq.s32.totalorder %s17, 1
      %p34 = por %p32, %p33
      %p35 = scmp.ne.s32.totalorder %s27, %s30
      %p36 = scmp.eq.s32.totalorder %s17, 0
      %p37 = por %p35, %p36
      %p38 = scmp.ne.s32.totalorder %s27, %s30
      %p39 = scmp.eq.s32.totalorder %s22, 1
      %p40 = por %p38, %p39
      %p41 = scmp.ne.s32.totalorder %s30, %s31
      %p42 = scmp.eq.s32.totalorder %s22, 0
      %p43 = por %p41, %p42
      %p44 = scmp.ne.s32.totalorder %s30, %s31
      %p45 = scmp.eq.s32.totalorder %s23, 1
      %p46 = por %p44, %p45
      %p48 = scmp.ne.s32.totalorder %s31, %s47
      %p49 = scmp.eq.s32.totalorder %s23, 0
      %p50 = por %p48, %p49
      %s52 = sadd.s32 %s51, 1
      %p55 = scmp.eq.s32.totalorder %s17, 1
      %p56 = scmp.ne.s32.totalorder %s51, %s53
      %p57 = scmp.eq.s32.totalorder %s17, 0
      %p58 = por %p56, %p57
      %p59 = scmp.ne.s32.totalorder %s51, %s53
      %p60 = scmp.eq.s32.totalorder %s22, 1
      %p61 = por %p59, %p60
      %p62 = scmp.ne.s32.totalorder %s53, %s54
      %p63 = scmp.eq.s32.totalorder %s22, 0
      %p64 = por %p62, %p63
      %p65 = scmp.ne.s32.totalorder %s53, %s54
      %p66 = scmp.eq.s32.totalorder %s23, 1
      %p67 = por %p65, %p66
      %p69 = scmp.ne.s32.totalorder %s54, %s68
      %p70 = scmp.eq.s32.totalorder %s23, 0
      %p71 = por %p69, %p70
      %s73 = sadd.s32 %s72, 1
      %p76 = scmp.eq.s32.totalorder %s17, 1
      %p77 = scmp.ne.s32.totalorder %s72, %s74
      %p78 = scmp.eq.s32.totalorder %s17, 0
      %p79 = por %p77, %p78
      %p80 = scmp.ne.s32.totalorder %s72, %s74
      %p81 = scmp.eq.s32.totalorder %s22, 1
      %p82 = por %p80, %p81
      %p83 = scmp.ne.s32.totalorder %s74, %s75
      %p84 = scmp.eq.s32.totalorder %s22, 0
      %p85 = por %p83, %p84
      %p86 = scmp.ne.s32.totalorder %s74, %s75
      %p87 = scmp.eq.s32.totalorder %s23, 1
      %p88 = por %p86, %p87
      %p90 = scmp.ne.s32.totalorder %s75, %s89
      %p91 = scmp.eq.s32.totalorder %s23, 0
      %p92 = por %p90, %p91
      %s94 = sadd.s32 %s93, 1
      %p97 = scmp.eq.s32.totalorder %s17, 1
      %p98 = scmp.ne.s32.totalorder %s93, %s95
      %p99 = scmp.eq.s32.totalorder %s17, 0
      %p100 = por %p98, %p99
      %p101 = scmp.ne.s32.totalorder %s93, %s95
      %p102 = scmp.eq.s32.totalorder %s22, 1
      %p103 = por %p101, %p102
      %p104 = scmp.ne.s32.totalorder %s95, %s96
      %p105 = scmp.eq.s32.totalorder %s22, 0
      %p106 = por %p104, %p105
      %p107 = scmp.ne.s32.totalorder %s95, %s96
      %p108 = scmp.eq.s32.totalorder %s23, 1
      %p109 = por %p107, %p108
      %p111 = scmp.ne.s32.totalorder %s96, %s110
      %p112 = scmp.eq.s32.totalorder %s23, 0
      %p113 = por %p111, %p112
      %s115 = sadd.s32 %s114, 1
      %p118 = scmp.eq.s32.totalorder %s17, 1
      %p119 = scmp.ne.s32.totalorder %s114, %s116
      %p120 = scmp.eq.s32.totalorder %s17, 0
      %p121 = por %p119, %p120
      %p122 = scmp.ne.s32.totalorder %s114, %s116
      %p123 = scmp.eq.s32.totalorder %s22, 1
      %p124 = por %p122, %p123
      %p125 = scmp.ne.s32.totalorder %s116, %s117
      %p126 = scmp.eq.s32.totalorder %s22, 0
      %p127 = por %p125, %p126
      %p128 = scmp.ne.s32.totalorder %s116, %s117
      %p129 = scmp.eq.s32.totalorder %s23, 1
      %p130 = por %p128, %p129
      %p132 = scmp.ne.s32.totalorder %s117, %s131
      %p133 = scmp.eq.s32.totalorder %s23, 0
      %p134 = por %p132, %p133
      %s135 = ssub.s32 %s17, %s24
      %p136 = scmp.eq.s32.totalorder %s135, 0
      %s138 = sadd.s32 %s137, 1
      %s139 = scalar_select %p136, %s137, %s138
      %p142 = pneg %p136
      %p143 = scmp.eq.s32.totalorder %s17, 1
      %p144 = por %p142, %p143
      %p145 = scmp.ne.s32.totalorder %s137, %s140
      %p146 = scmp.eq.s32.totalorder %s17, 0
      %p147 = por %p145, %p146
      %p148 = scmp.ne.s32.totalorder %s137, %s140
      %p149 = scmp.eq.s32.totalorder %s22, 1
      %p150 = por %p148, %p149
      %p151 = scmp.ne.s32.totalorder %s140, %s141
      %p152 = scmp.eq.s32.totalorder %s22, 0
      %p153 = por %p151, %p152
      %p154 = scmp.ne.s32.totalorder %s140, %s141
      %p155 = scmp.eq.s32.totalorder %s23, 1
      %p156 = por %p154, %p155
      %p158 = scmp.ne.s32.totalorder %s141, %s157
      %p159 = scmp.eq.s32.totalorder %s23, 0
      %p160 = por %p158, %p159
      %p161 = scmp.le.s32.totalorder 1, %s17
      %p162 = scmp.lt.s32.totalorder %s17, 3
      %p163 = pnand %p161, %p162
      %p164 = pneg %p163
      // Predicated region
      $region9: #{tpu_custom_call.1} parent=5 // pred_check
        _
      $region10: #{tpu_custom_call.1} parent=5 // pred_check_branch
        %166 = sbr.rel (%p163) target = $region12
      $region11: #{tpu_custom_call.1} parent=5 // pred_region
        %s167 = ssub.s32 %s17, 1
        // Predicated region
        $region13: #{tpu_custom_call.1} parent=11 // pred_check
          %p168 = pneg %p64
        $region14: #{tpu_custom_call.1} parent=11 // pred_check_branch
          %170 = sbr.rel (%p168) target = $region16
        $region15: #{tpu_custom_call.1} parent=11 // pred_region
          _
        $region16: #{tpu_custom_call.1} parent=11 // pred_fallthru
          _
        // Predicated region
        $region17: #{tpu_custom_call.1} parent=11 // pred_check
          %p171 = pneg %p85
        $region18: #{tpu_custom_call.1} parent=11 // pred_check_branch
          %173 = sbr.rel (%p171) target = $region20
        $region19: #{tpu_custom_call.1} parent=11 // pred_region
          _
        $region20: #{tpu_custom_call.1} parent=11 // pred_fallthru
          _
        // Predicated region
        $region21: #{tpu_custom_call.1} parent=11 // pred_check
          %p174 = pneg %p106
        $region22: #{tpu_custom_call.1} parent=11 // pred_check_branch
          %176 = sbr.rel (%p174) target = $region24
        $region23: #{tpu_custom_call.1} parent=11 // pred_region
          _
        $region24: #{tpu_custom_call.1} parent=11 // pred_fallthru
          _
        // Predicated region
        $region25: #{tpu_custom_call.1} parent=11 // pred_check
          %p177 = pneg %p127
        $region26: #{tpu_custom_call.1} parent=11 // pred_check_branch
          %179 = sbr.rel (%p177) target = $region28
        $region27: #{tpu_custom_call.1} parent=11 // pred_region
          _
        $region28: #{tpu_custom_call.1} parent=11 // pred_fallthru
          _
      $region12: #{tpu_custom_call.1} parent=5 // pred_fallthru
        _
      %p180 = scmp.lt.s32.totalorder %s17, 2
      // Predicated region
      $region29: #{tpu_custom_call.1} parent=5 // pred_check
        %p181 = pneg %p180
      $region30: #{tpu_custom_call.1} parent=5 // pred_check_branch
        %183 = sbr.rel (%p181) target = $region32
      $region31: #{tpu_custom_call.1} parent=5 // pred_region
        // Predicated region
        $region33: #{tpu_custom_call.1} parent=31 // pred_check
          %p184 = pneg %p37
        $region34: #{tpu_custom_call.1} parent=31 // pred_check_branch
          %186 = sbr.rel (%p184) target = $region36
        $region35: #{tpu_custom_call.1} parent=31 // pred_region
          %s187 = sand.u32 %s27, 1
          %s188 = scalar_lea.sflag [#allocation3], %s187
          %s189 = sand.u32 %s27, 1
          %s190 = smul.addr %s189, 64
          %s191 = scalar_lea.vmem [#allocation2], %s190
          %s192 = smul.u32 2, %s17
          %s194 = ssub.s32 1024, 1024
          %195 = vsyncadd %s188, %s194
          %s196 = smul.addr %s192, 4
          %s197 = smul.addr %s196, 128
          %s198 = scalar_lea.hbm %s0, %s197
          %s199 = sshll.u32 %s191, 4
          %s200 = int_to_ptr.vmem [resolvable:$true] %s199
          %205 = dma.hbm_to_vmem [thread:$0]  %s198, 1024, %s200, %s188, 128, 128, 8
        $region36: #{tpu_custom_call.1} parent=31 // pred_fallthru
          _
      $region32: #{tpu_custom_call.1} parent=5 // pred_fallthru
        _
      %p206 = scmp.le.s32.totalorder 1, %s17
      %p207 = scmp.lt.s32.totalorder %s17, 3
      %p208 = pnand %p206, %p207
      %p209 = pneg %p208
      // Predicated region
      $region37: #{tpu_custom_call.1} parent=5 // pred_check
        _
      $region38: #{tpu_custom_call.1} parent=5 // pred_check_branch
        %211 = sbr.rel (%p208) target = $region40
      $region39: #{tpu_custom_call.1} parent=5 // pred_region
        %s212 = ssub.s32 %s17, 1
        %s213 = sand.u32 %s30, 1
        %s214 = scalar_lea.sflag [#allocation3], %s213
        %s215 = sand.u32 %s30, 1
        %s216 = smul.addr %s215, 64
        %s217 = scalar_lea.vmem [#allocation2], %s216
        // Predicated region
        $region41: #{tpu_custom_call.1} parent=39 // pred_check
          %p218 = pneg %p43
        $region42: #{tpu_custom_call.1} parent=39 // pred_check_branch
          %220 = sbr.rel (%p218) target = $region44
        $region43: #{tpu_custom_call.1} parent=39 // pred_region
          %221 = dma.done %s214, 1024
        $region44: #{tpu_custom_call.1} parent=39 // pred_fallthru
          _
        %s222 = sand.u32 %s30, 1
        %s223 = scalar_lea.sflag [#allocation3], %s222
        %s224 = sand.u32 %s30, 1
        %s225 = smul.addr %s224, 64
        %s226 = scalar_lea.vmem [#allocation2], %s225
        %p227 = pneg %p43
        %p228 = pneg %p40
        %p229 = pneg %p64
        %p230 = pneg %p61
        %p231 = pneg %p85
        %p232 = pneg %p82
        %p233 = pneg %p106
        %p234 = pneg %p103
        %p235 = pneg %p127
        %p236 = pneg %p124
        %p237 = pneg %p153
        %p238 = pneg %p150
        %s239 = sand.u32 %s140, 1
        %s240 = scalar_lea.sflag [#allocation4], %s239
        %s241 = sand.u32 %s140, 1
        %s242 = smul.addr %s241, 64
        %s243 = scalar_lea.vmem [#allocation5], %s242
        %s244 = smul.u32 2, %s22
        %s245 = smul.u32 2, %s22
        %v246 = vld [vmem:[%s217] sm:$0xff]
        %v247 = vld [vmem:[%s217 + $0x8] sm:$0xff]
        %v248 = vld [vmem:[%s217 + $0x10] sm:$0xff]
        %v249 = vld [vmem:[%s217 + $0x18] sm:$0xff]
        %v250 = vld [vmem:[%s217 + $0x20] sm:$0xff]
        %v251 = vld [vmem:[%s217 + $0x28] sm:$0xff]
        %v252 = vld [vmem:[%s217 + $0x30] sm:$0xff]
        %v253 = vld [vmem:[%s217 + $0x38] sm:$0xff]
        %vm254 = vcmask 523264
        %v255 = vsel %vm254, %v246, 0.0
        %256 = vadd.xlane.f32.xlu0 %v255
        %v257 = vpop.xlane.xlu0 %256
        %v258 = vsel %vm254, %v247, 0.0
        %259 = vadd.xlane.f32.xlu0 %v258
        %v260 = vpop.xlane.xlu0 %259
        %v261 = vsel %vm254, %v248, 0.0
        %262 = vadd.xlane.f32.xlu0 %v261
        %v263 = vpop.xlane.xlu0 %262
        %v264 = vsel %vm254, %v249, 0.0
        %265 = vadd.xlane.f32.xlu0 %v264
        %v266 = vpop.xlane.xlu0 %265
        %v267 = vsel %vm254, %v250, 0.0
        %268 = vadd.xlane.f32.xlu0 %v267
        %v269 = vpop.xlane.xlu0 %268
        %v270 = vsel %vm254, %v251, 0.0
        %271 = vadd.xlane.f32.xlu0 %v270
        %v272 = vpop.xlane.xlu0 %271
        %v273 = vsel %vm254, %v252, 0.0
        %274 = vadd.xlane.f32.xlu0 %v273
        %v275 = vpop.xlane.xlu0 %274
        %v276 = vsel %vm254, %v253, 0.0
        %277 = vadd.xlane.f32.xlu0 %v276
        %v278 = vpop.xlane.xlu0 %277
        %v279 = vmul.f32 %v257, 0.015625
        %v280 = vmul.f32 %v260, 0.015625
        %v281 = vmul.f32 %v263, 0.015625
        %v282 = vmul.f32 %v266, 0.015625
        %v283 = vmul.f32 %v269, 0.015625
        %v284 = vmul.f32 %v272, 0.015625
        %v285 = vmul.f32 %v275, 0.015625
        %v286 = vmul.f32 %v278, 0.015625
        %v287 = vld [vmem:[%s1] sm:$0xff]
        %v288 = vld [vmem:[%s1 + $0x8] sm:$0xff]
        %v289 = vld [vmem:[%s1 + $0x10] sm:$0xff]
        %v290 = vld [vmem:[%s1 + $0x18] sm:$0xff]
        %v291 = vld [vmem:[%s2] sm:$0x1]
        %v293 = vlaneseq
        %v294 = vshrl.u32 %v293, 7
        %v295 = vsub.s32 0, %v294
        %v296 = vrot.slane %v291, %v295
        %v306 = vlaneseq
        %v307 = vand.u32 %v306, 127
        %v308 = vlaneseq
        %v309 = vshrl.u32 %v308, 7
        %v310 = vsub.s32 %v307, %v309
        %v311 = vrot.slane %v279, %v310
        %v312 = vadd.s32 %v307, 4294967288
        %v313 = vlaneseq
        %v314 = vshrl.u32 %v313, 7
        %v315 = vsub.s32 %v312, %v314
        %v316 = vrot.slane %v280, %v315
        %vm317 = vcmask 130112
        %v318 = vsel %vm317, %v316, %v311
        %v319 = vadd.s32 %v307, 4294967280
        %v320 = vlaneseq
        %v321 = vshrl.u32 %v320, 7
        %v322 = vsub.s32 %v319, %v321
        %v323 = vrot.slane %v281, %v322
        %vm324 = vcmask 195712
        %v325 = vsel %vm324, %v323, %v318
        %v326 = vadd.s32 %v307, 4294967272
        %v327 = vlaneseq
        %v328 = vshrl.u32 %v327, 7
        %v329 = vsub.s32 %v326, %v328
        %v330 = vrot.slane %v282, %v329
        %vm331 = vcmask 261312
        %v332 = vsel %vm331, %v330, %v325
        %v333 = vlaneseq
        %v334 = vshrl.u32 %v333, 7
        %v335 = vsub.s32 %v307, %v334
        %v336 = vrot.slane %v283, %v335
        %v337 = vlaneseq
        %v338 = vshrl.u32 %v337, 7
        %v339 = vsub.s32 %v312, %v338
        %v340 = vrot.slane %v284, %v339
        %v341 = vsel %vm317, %v340, %v336
        %v342 = vlaneseq
        %v343 = vshrl.u32 %v342, 7
        %v344 = vsub.s32 %v319, %v343
        %v345 = vrot.slane %v285, %v344
        %v346 = vsel %vm324, %v345, %v341
        %v347 = vlaneseq
        %v348 = vshrl.u32 %v347, 7
        %v349 = vsub.s32 %v326, %v348
        %v350 = vrot.slane %v286, %v349
        %v351 = vsel %vm331, %v350, %v346
        %vm352 = vcmask 1041409
        %v353 = vsel %vm352, %v351, %v332
        %vm354 = vcmask 261120
        %v355 = vsel %vm354, %v353, 0
        %357 = vmatprep.subr.mxu0 0.0
        %358 = vmatpush1.msra.mxu0 0.0
        %359 = vmatprep.subr.mxu0 0.0
        %360 = vmatpush1.msra.mxu0 0.0
        %361 = vmatprep.subr.mxu0 0.0
        %362 = vmatpush1.msra.mxu0 0.0
        %363 = vmatprep.subr.mxu0 0.0
        %364 = vmatpush1.msra.mxu0 0.0
        %365 = vmatprep.subr.mxu0 0.0
        %366 = vmatpush1.msra.mxu0 0.0
        %367 = vmatprep.subr.mxu0 0.0
        %368 = vmatpush1.msra.mxu0 0.0
        %369 = vmatprep.subr.mxu0 0.0
        %370 = vmatpush1.msra.mxu0 0.0
        %371 = vmatprep.subr.mxu0 0.0
        %372 = vmatpush1.msra.mxu0 0.0
        %373 = vmatprep.subr.mxu0 0.0
        %374 = vmatpush1.msra.mxu0 0.0
        %375 = vmatprep.subr.mxu0 0.0
        %376 = vmatpush1.msra.mxu0 0.0
        %377 = vmatprep.subr.mxu0 0.0
        %378 = vmatpush1.msra.mxu0 0.0
        %379 = vmatprep.subr.mxu0 0.0
        %380 = vmatpush1.msra.mxu0 0.0
        %381 = vmatprep.subr.mxu0 0.0
        %382 = vmatpush1.msra.mxu0 %v290
        %383 = vmatprep.subr.mxu0 0.0
        %384 = vmatpush1.msra.mxu0 %v289
        %385 = vmatprep.subr.mxu0 0.0
        %386 = vmatpush1.msra.mxu0 %v288
        %387 = vmatprep.subr.mxu0 0.0
        %388 = vmatpush1.msra.mxu0 %v287
        %389 = vmatprep.subr.mxu0 0.0
        %390 = vmatpush2.msra.mxu0 0.0
        %391 = vmatprep.subr.mxu0 0.0
        %392 = vmatpush2.msra.mxu0 0.0
        %393 = vmatprep.subr.mxu0 0.0
        %394 = vmatpush2.msra.mxu0 0.0
        %395 = vmatprep.subr.mxu0 0.0
        %396 = vmatpush2.msra.mxu0 0.0
        %397 = vmatprep.subr.mxu0 0.0
        %398 = vmatpush2.msra.mxu0 0.0
        %399 = vmatprep.subr.mxu0 0.0
        %400 = vmatpush2.msra.mxu0 0.0
        %401 = vmatprep.subr.mxu0 0.0
        %402 = vmatpush2.msra.mxu0 0.0
        %403 = vmatprep.subr.mxu0 0.0
        %404 = vmatpush2.msra.mxu0 0.0
        %405 = vmatprep.subr.mxu0 0.0
        %406 = vmatpush2.msra.mxu0 0.0
        %407 = vmatprep.subr.mxu0 0.0
        %408 = vmatpush2.msra.mxu0 0.0
        %409 = vmatprep.subr.mxu0 0.0
        %410 = vmatpush2.msra.mxu0 0.0
        %411 = vmatprep.subr.mxu0 0.0
        %412 = vmatpush2.msra.mxu0 0.0
        %413 = vmatprep.subr.mxu0 0.0
        %414 = vmatpush2.msra.mxu0 0.0
        %415 = vmatprep.subr.mxu0 0.0
        %416 = vmatpush2.msra.mxu0 0.0
        %417 = vmatprep.subr.mxu0 0.0
        %418 = vmatpush2.msra.mxu0 0.0
        %419 = vmatprep.subr.mxu0 0.0
        %420 = vmatpush2.msra.mxu0 0.0
        %421 = vmatprep.mubr.f32.mxu0 0.0
        %422 = vmatmul.mubr.f32.gmra.mxu0 %v355
        %v423 = vpop.f32.mrf.mxu0
        %v424 = vadd.f32 %v296, %v423
        %v425 = vpop.f32.mrf.mxu0
        %426 = vdwg.mxu0
        %v427 = vmax.f32 %v424, 0.0
        %v428 = vld [vmem:[%s3] sm:$0x3]
        %v429 = vld [vmem:[%s4] sm:$0x1]
        %v431 = vlaneseq
        %v432 = vshrl.u32 %v431, 7
        %v433 = vsub.s32 0, %v432
        %v434 = vrot.slane %v429, %v433
        %vm436 = vcmask 15360
        %v438 = vsel %vm436, %v427, 0
        %vm440 = vcmask 1041408
        %v442 = vsel %vm440, %v428, 0
        %444 = vmatprep.subr.mxu0 0.0
        %445 = vmatpush1.msra.mxu0 0.0
        %446 = vmatprep.subr.mxu0 0.0
        %447 = vmatpush1.msra.mxu0 0.0
        %448 = vmatprep.subr.mxu0 0.0
        %449 = vmatpush1.msra.mxu0 0.0
        %450 = vmatprep.subr.mxu0 0.0
        %451 = vmatpush1.msra.mxu0 0.0
        %452 = vmatprep.subr.mxu0 0.0
        %453 = vmatpush1.msra.mxu0 0.0
        %454 = vmatprep.subr.mxu0 0.0
        %455 = vmatpush1.msra.mxu0 0.0
        %456 = vmatprep.subr.mxu0 0.0
        %457 = vmatpush1.msra.mxu0 0.0
        %458 = vmatprep.subr.mxu0 0.0
        %459 = vmatpush1.msra.mxu0 0.0
        %460 = vmatprep.subr.mxu0 0.0
        %461 = vmatpush1.msra.mxu0 0.0
        %462 = vmatprep.subr.mxu0 0.0
        %463 = vmatpush1.msra.mxu0 0.0
        %464 = vmatprep.subr.mxu0 0.0
        %465 = vmatpush1.msra.mxu0 0.0
        %466 = vmatprep.subr.mxu0 0.0
        %467 = vmatpush1.msra.mxu0 0.0
        %468 = vmatprep.subr.mxu0 0.0
        %469 = vmatpush1.msra.mxu0 0.0
        %470 = vmatprep.subr.mxu0 0.0
        %471 = vmatpush1.msra.mxu0 0.0
        %472 = vmatprep.subr.mxu0 0.0
        %473 = vmatpush1.msra.mxu0 0.0
        %474 = vmatprep.subr.mxu0 0.0
        %475 = vmatpush1.msra.mxu0 %v442
        %476 = vmatprep.subr.mxu0 0.0
        %477 = vmatpush2.msra.mxu0 0.0
        %478 = vmatprep.subr.mxu0 0.0
        %479 = vmatpush2.msra.mxu0 0.0
        %480 = vmatprep.subr.mxu0 0.0
        %481 = vmatpush2.msra.mxu0 0.0
        %482 = vmatprep.subr.mxu0 0.0
        %483 = vmatpush2.msra.mxu0 0.0
        %484 = vmatprep.subr.mxu0 0.0
        %485 = vmatpush2.msra.mxu0 0.0
        %486 = vmatprep.subr.mxu0 0.0
        %487 = vmatpush2.msra.mxu0 0.0
        %488 = vmatprep.subr.mxu0 0.0
        %489 = vmatpush2.msra.mxu0 0.0
        %490 = vmatprep.subr.mxu0 0.0
        %491 = vmatpush2.msra.mxu0 0.0
        %492 = vmatprep.subr.mxu0 0.0
        %493 = vmatpush2.msra.mxu0 0.0
        %494 = vmatprep.subr.mxu0 0.0
        %495 = vmatpush2.msra.mxu0 0.0
        %496 = vmatprep.subr.mxu0 0.0
        %497 = vmatpush2.msra.mxu0 0.0
        %498 = vmatprep.subr.mxu0 0.0
        %499 = vmatpush2.msra.mxu0 0.0
        %500 = vmatprep.subr.mxu0 0.0
        %501 = vmatpush2.msra.mxu0 0.0
        %502 = vmatprep.subr.mxu0 0.0
        %503 = vmatpush2.msra.mxu0 0.0
        %504 = vmatprep.subr.mxu0 0.0
        %505 = vmatpush2.msra.mxu0 0.0
        %506 = vmatprep.subr.mxu0 0.0
        %507 = vmatpush2.msra.mxu0 0.0
        %508 = vmatprep.mubr.f32.mxu0 0.0
        %509 = vmatmul.mubr.f32.gmra.mxu0 %v438
        %v510 = vpop.f32.mrf.mxu0
        %v511 = vadd.f32 %v434, %v510
        %v512 = vpop.f32.mrf.mxu0
        %513 = vdwg.mxu0
        %v514 = vxor.u32 %v511, 2147483648
        %v515 = vmul.f32 %v514, 1.442695
        %v516 = vpow.pop %v515
        %v517 = vadd.f32 %v516, 1.0
        %v518 = vrcp.pop %v517
        %v519 = vmul.f32 1.0, %v518
        %v520 = vlaneseq
        %v521 = vshrl.u32 %v520, 7
        %v522 = vsub.s32 0, %v521
        %v523 = vrot.slane %v519, %v522
        %525 = vbcast.lane.b32.xlu0 %v523, 256
        %v526 = vpop.permute.xlu0 %525
        %s528 = sor.u32 256, 8
        %529 = vbcast.lane.b32.xlu0 %v523, %s528
        %v530 = vpop.permute.xlu0 %529
        %s532 = sor.u32 256, 16
        %533 = vbcast.lane.b32.xlu0 %v523, %s532
        %v534 = vpop.permute.xlu0 %533
        %s536 = sor.u32 256, 24
        %537 = vbcast.lane.b32.xlu0 %v523, %s536
        %v538 = vpop.permute.xlu0 %537
        %v539 = vlaneseq
        %v540 = vshrl.u32 %v539, 7
        %v541 = vsub.s32 1, %v540
        %v542 = vrot.slane %v519, %v541
        %544 = vbcast.lane.b32.xlu0 %v542, 256
        %v545 = vpop.permute.xlu0 %544
        %s547 = sor.u32 256, 8
        %548 = vbcast.lane.b32.xlu0 %v542, %s547
        %v549 = vpop.permute.xlu0 %548
        %s551 = sor.u32 256, 16
        %552 = vbcast.lane.b32.xlu0 %v542, %s551
        %v553 = vpop.permute.xlu0 %552
        %s555 = sor.u32 256, 24
        %556 = vbcast.lane.b32.xlu0 %v542, %s555
        %v557 = vpop.permute.xlu0 %556
        %v558 = vmul.f32 %v246, %v526
        %v559 = vmul.f32 %v247, %v530
        %v560 = vmul.f32 %v248, %v534
        %v561 = vmul.f32 %v249, %v538
        %v562 = vmul.f32 %v250, %v545
        %v563 = vmul.f32 %v251, %v549
        %v564 = vmul.f32 %v252, %v553
        %v565 = vmul.f32 %v253, %v557
        %566 = vst.msk [vmem:[%s243] sm:$0xff] %vm254, %v558
        %567 = vst.msk [vmem:[%s243 + $0x8] sm:$0xff] %vm254, %v559
        %568 = vst.msk [vmem:[%s243 + $0x10] sm:$0xff] %vm254, %v560
        %569 = vst.msk [vmem:[%s243 + $0x18] sm:$0xff] %vm254, %v561
        %570 = vst.msk [vmem:[%s243 + $0x20] sm:$0xff] %vm254, %v562
        %571 = vst.msk [vmem:[%s243 + $0x28] sm:$0xff] %vm254, %v563
        %572 = vst.msk [vmem:[%s243 + $0x30] sm:$0xff] %vm254, %v564
        %573 = vst.msk [vmem:[%s243 + $0x38] sm:$0xff] %vm254, %v565
        %s574 = sand.u32 %s140, 1
        %s575 = scalar_lea.sflag [#allocation4], %s574
        %s576 = sand.u32 %s140, 1
        %s577 = smul.addr %s576, 64
        %s578 = scalar_lea.vmem [#allocation5], %s577
        // Predicated region
        $region45: #{tpu_custom_call.1} parent=39 // pred_check
          %p579 = pneg %p150
        $region46: #{tpu_custom_call.1} parent=39 // pred_check_branch
          %581 = sbr.rel (%p579) target = $region48
        $region47: #{tpu_custom_call.1} parent=39 // pred_region
          %s582 = smul.u32 2, %s22
          %s584 = ssub.s32 1024, 1024
          %585 = vsyncadd %s575, %s584
          %s586 = smul.addr %s582, 4
          %s587 = smul.addr %s586, 128
          %s588 = scalar_lea.hbm %s5, %s587
          %s589 = sshll.u32 %s578, 4
          %s590 = int_to_ptr.vmem [resolvable:$true] %s589
          %595 = dma.vmem_to_hbm [thread:$0]  %s590, 1024, %s588, %s575, 128, 128, 8
        $region48: #{tpu_custom_call.1} parent=39 // pred_fallthru
          _
      $region40: #{tpu_custom_call.1} parent=5 // pred_fallthru
        _
      %p596 = scmp.le.s32.totalorder 2, %s17
      // Predicated region
      $region49: #{tpu_custom_call.1} parent=5 // pred_check
        %p597 = pneg %p596
      $region50: #{tpu_custom_call.1} parent=5 // pred_check_branch
        %599 = sbr.rel (%p597) target = $region52
      $region51: #{tpu_custom_call.1} parent=5 // pred_region
        %s600 = ssub.s32 %s17, 2
        // Predicated region
        $region53: #{tpu_custom_call.1} parent=51 // pred_check
          %p601 = pneg %p156
        $region54: #{tpu_custom_call.1} parent=51 // pred_check_branch
          %603 = sbr.rel (%p601) target = $region56
        $region55: #{tpu_custom_call.1} parent=51 // pred_region
          %s604 = sand.u32 %s141, 1
          %s605 = scalar_lea.sflag [#allocation4], %s604
          %s606 = sand.u32 %s141, 1
          %s607 = smul.addr %s606, 64
          %s608 = scalar_lea.vmem [#allocation5], %s607
          %609 = dma.done %s605, 1024
        $region56: #{tpu_custom_call.1} parent=51 // pred_fallthru
          _
      $region52: #{tpu_custom_call.1} parent=5 // pred_fallthru
        _
    $region6: #{tpu_custom_call.1} parent=1 // loop_footer
      %s21 = sadd.s32 1, %s17
    $region7: #{tpu_custom_call.1} parent=1 // loop_footer_branch
      %16 = sbr.rel target = $region3
    $region8: #{tpu_custom_call.1} parent=1 // loop_exit
      _
    %610 = vsyncpa [#allocation3], 1
    %s611 = scalar_lea.sflag [#allocation3], 1
    %612 = vsyncpa %s611, 1
    %613 = vsyncpa [#allocation4], 1
    %s614 = scalar_lea.sflag [#allocation4], 1
    %615 = vsyncpa %s614, 1

</llo_original>
